<compile_context>
chip_gen: v7x
topology: tpu7x:2x2x1
jax: 0.10.0
libtpu: 0.0.40
codegen_flags: <defaults>
</compile_context>

<pallas_src>
import jax
import jax.numpy as jnp
from jax.experimental import pallas as pl
from jax.experimental.pallas import tpu as pltpu

HIDDEN = 50


def _round_up(n, m):
    return (n + m - 1) // m * m


def dueling_mlp_kernel(x_ref, w1_ref, b1_ref, wh_ref, bh_ref, out_ref):
    # fc1: cast x to the weight (bf16) dtype at the MXU input only;
    # accumulate and do all elementwise work in f32.
    x = x_ref[...].astype(w1_ref.dtype)
    h = jnp.dot(x, w1_ref[...], preferred_element_type=jnp.float32)
    h = jnp.maximum(h + b1_ref[...], 0.0)                        # (TB, H) f32
    # Folded dueling head: single (H, A) MXU pass; combine already baked in.
    q = jnp.dot(h.astype(wh_ref.dtype), wh_ref[...],
                preferred_element_type=jnp.float32)
    out_ref[...] = (q + bh_ref[...]).astype(out_ref.dtype)       # (TB, A)


def dueling_mlp_policy(x, params, *, block_b=2048, out_dtype=jnp.float32):
    """x: (batch, num_states) in its native dtype. params: dict from init_params."""
    B, S = x.shape
    H = params["w1_t"].shape[1]
    A = params["wh_t"].shape[1]

    # Batch tile: multiple of 8 (f32 sublane); keep >= 2 grid steps when B is
    # large enough so both v7x TensorCores get work via the "parallel" axis.
    tb = max(8, min(block_b, _round_up(pl.cdiv(B, 2), 8)))
    grid = (pl.cdiv(B, tb),)

    x_itemsize = jnp.dtype(x.dtype).itemsize
    w_itemsize = jnp.dtype(params["w1_t"].dtype).itemsize
    out_itemsize = jnp.dtype(out_dtype).itemsize
    cost = pl.CostEstimate(
        flops=2 * B * (S * H + H * A),
        transcendentals=0,
        bytes_accessed=(B * (S * x_itemsize + A * out_itemsize)
                        + (S * H + H * A) * w_itemsize
                        + (H + A) * 4),
    )

    return pl.pallas_call(
        dueling_mlp_kernel,
        out_shape=jax.ShapeDtypeStruct((B, A), out_dtype),
        grid=grid,
        in_specs=[
            pl.BlockSpec((tb, S), lambda i: (i, 0)),     # x: tiled over batch
            pl.BlockSpec((S, H), lambda i: (0, 0)),      # w1: resident
            pl.BlockSpec((1, H), lambda i: (0, 0)),      # b1: resident
            pl.BlockSpec((H, A), lambda i: (0, 0)),      # folded head W: resident
            pl.BlockSpec((1, A), lambda i: (0, 0)),      # folded head b: resident
        ],
        out_specs=pl.BlockSpec((tb, A), lambda i: (i, 0)),
        compiler_params=pltpu.CompilerParams(
            dimension_semantics=("parallel",)),
        cost_estimate=cost,
    )(x, params["w1_t"], params["b1"], params["wh_t"], params["bh"])


def init_params(key, num_states, num_actions, hidden=HIDDEN,
                compute_dtype=jnp.bfloat16):
    """Matches the module init: weights ~ N(0, 0.1), biases ~ PyTorch Linear
    default U(-1/sqrt(fan_in), 1/sqrt(fan_in)).  The dueling combine
    (s + a - mean(a)) is folded into the head weights offline, in f32,
    before the bf16 cast."""
    k = jax.random.split(key, 6)
    w1 = 0.1 * jax.random.normal(k[0], (hidden, num_states), jnp.float32)
    ws = 0.1 * jax.random.normal(k[1], (1, hidden), jnp.float32)
    wa = 0.1 * jax.random.normal(k[2], (num_actions, hidden), jnp.float32)
    b1 = jax.random.uniform(k[3], (hidden,), jnp.float32,
                            -1.0 / num_states ** 0.5, 1.0 / num_states ** 0.5)
    bs = jax.random.uniform(k[4], (1,), jnp.float32,
                            -1.0 / hidden ** 0.5, 1.0 / hidden ** 0.5)
    ba = jax.random.uniform(k[5], (num_actions,), jnp.float32,
                            -1.0 / hidden ** 0.5, 1.0 / hidden ** 0.5)
    # Fold: out[:, a] = h @ (ws + wa[a] - mean_j wa[j])^T + (bs + ba[a] - mean_j ba[j])
    w_eff = ws + wa - jnp.mean(wa, axis=0, keepdims=True)        # (A, hidden) f32
    b_eff = bs + ba - jnp.mean(ba)                               # (A,)        f32
    return {
        "w1_t": w1.T.astype(compute_dtype),      # (S, H)  bf16 (MXU input)
        "b1": b1[None, :],                       # (1, H)  f32
        "wh_t": w_eff.T.astype(compute_dtype),   # (H, A)  bf16 (MXU input)
        "bh": b_eff[None, :],                    # (1, A)  f32
        # Raw f32 weights kept only for the unfused reference check below.
        "_w1": w1, "_b1": b1, "_ws": ws, "_bs": bs, "_wa": wa, "_ba": ba,
    }


def reference(x, p):
    """Pure-JAX reference mirroring the kernel's dtype choices exactly."""
    cd = p["w1_t"].dtype
    h = jnp.dot(x.astype(cd), p["w1_t"], preferred_element_type=jnp.float32)
    h = jnp.maximum(h + p["b1"], 0.0)
    q = jnp.dot(h.astype(cd), p["wh_t"], preferred_element_type=jnp.float32)
    return q + p["bh"]


def reference_unfused_f32(x, p):
    """Original (unfused, full-f32) PyTorch-style forward, to validate the fold."""
    h = jnp.maximum(x @ p["_w1"].T + p["_b1"], 0.0)
    s = h @ p["_ws"].T + p["_bs"]
    a = h @ p["_wa"].T + p["_ba"]
    return s + a - jnp.mean(a, axis=1, keepdims=True)


if __name__ == "__main__":
    num_states, num_actions = 16, 8
    key = jax.random.PRNGKey(0)
    kx, kp, kx2 = jax.random.split(key, 3)
    params = init_params(kp, num_states, num_actions)

    # Small shape consistent with the module.
    batch = 2
    x = jax.random.normal(kx, (batch, num_states), jnp.float32)
    out = dueling_mlp_policy(x, params)
    jax.block_until_ready(out)
    assert out.shape == (batch, num_actions)
    assert jnp.allclose(out, reference(x, params), atol=1e-3, rtol=1e-3)
    # bf16 MXU inputs vs. full-f32 torch semantics: loose tolerance.
    assert jnp.allclose(out, reference_unfused_f32(x, params), atol=3e-2, rtol=3e-2)

    # Exercise multi-tile grid + masked partial final block (37 = 2*16 + 5).
    batch2 = 37
    x2 = jax.random.normal(kx2, (batch2, num_states), jnp.float32)
    out2 = dueling_mlp_policy(x2, params, block_b=16)
    jax.block_until_ready(out2)
    assert out2.shape == (batch2, num_actions)
    assert jnp.allclose(out2, reference(x2, params), atol=1e-3, rtol=1e-3)
    assert jnp.allclose(out2, reference_unfused_f32(x2, params), atol=3e-2, rtol=3e-2)

    print("KERNEL_OK")
</pallas_src>

<mosaic_0001>
module attributes {stable_mosaic.version = 11 : i64} {
  func.func @dueling_mlp_kernel(%arg0: i32, %arg1: memref<8x16xf32, #tpu.memory_space<vmem>>, %arg2: memref<16x50xbf16, #tpu.memory_space<vmem>>, %arg3: memref<1x50xf32, #tpu.memory_space<vmem>>, %arg4: memref<50x8xbf16, #tpu.memory_space<vmem>>, %arg5: memref<1x8xf32, #tpu.memory_space<vmem>>, %arg6: memref<8x8xf32, #tpu.memory_space<vmem>>) attributes {dimension_semantics = [#tpu.dimension_semantics<parallel>], iteration_bounds = array<i64: 1>, scalar_prefetch = 0 : i64, scratch_operands = 0 : i64, tpu.core_type = #tpu.core_type<tc>, window_params = [{transform_indices = @transform_0, window_bounds = array<i64: 8, 16>}, {pipeline_mode = #tpu.pipeline_mode<synchronous>, transform_indices = @transform_1, window_bounds = array<i64: 16, 50>}, {pipeline_mode = #tpu.pipeline_mode<synchronous>, transform_indices = @transform_2, window_bounds = array<i64: 1, 50>}, {pipeline_mode = #tpu.pipeline_mode<synchronous>, transform_indices = @transform_3, window_bounds = array<i64: 50, 8>}, {pipeline_mode = #tpu.pipeline_mode<synchronous>, transform_indices = @transform_4, window_bounds = array<i64: 1, 8>}, {transform_indices = @transform_5, window_bounds = array<i64: 8, 8>}]} {
    %c0 = arith.constant 0 : index
    %c0_0 = arith.constant 0 : index
    %0 = vector.load %arg1[%c0, %c0_0] : memref<8x16xf32, #tpu.memory_space<vmem>>, vector<8x16xf32>
    %1 = arith.truncf %0 : vector<8x16xf32> to vector<8x16xbf16>
    %c0_1 = arith.constant 0 : index
    %c0_2 = arith.constant 0 : index
    %2 = vector.load %arg2[%c0_1, %c0_2] : memref<16x50xbf16, #tpu.memory_space<vmem>>, vector<16x50xbf16>
    %cst = arith.constant dense<0.000000e+00> : vector<8x50xf32>
    %3 = tpu.matmul %1, %2, %cst {dimension_numbers = #tpu.dot_dimension_numbers<[1], [0], [0], [1], [0, 0, 1, 1], [], []>} : vector<8x16xbf16>, vector<16x50xbf16>, vector<8x50xf32> -> vector<8x50xf32>
    %c0_3 = arith.constant 0 : index
    %c0_4 = arith.constant 0 : index
    %4 = vector.load %arg3[%c0_3, %c0_4] : memref<1x50xf32, #tpu.memory_space<vmem>>, vector<1x50xf32>
    %5 = vector.broadcast %4 : vector<1x50xf32> to vector<8x50xf32>
    %6 = arith.addf %3, %5 : vector<8x50xf32>
    %cst_5 = arith.constant 0.000000e+00 : f32
    %7 = vector.broadcast %cst_5 : f32 to vector<8x50xf32>
    %8 = arith.maximumf %6, %7 : vector<8x50xf32>
    %9 = arith.truncf %8 : vector<8x50xf32> to vector<8x50xbf16>
    %c0_6 = arith.constant 0 : index
    %c0_7 = arith.constant 0 : index
    %10 = vector.load %arg4[%c0_6, %c0_7] : memref<50x8xbf16, #tpu.memory_space<vmem>>, vector<50x8xbf16>
    %cst_8 = arith.constant dense<0.000000e+00> : vector<8x8xf32>
    %11 = tpu.matmul %9, %10, %cst_8 {dimension_numbers = #tpu.dot_dimension_numbers<[1], [0], [0], [1], [0, 0, 1, 1], [], []>} : vector<8x50xbf16>, vector<50x8xbf16>, vector<8x8xf32> -> vector<8x8xf32>
    %c0_9 = arith.constant 0 : index
    %c0_10 = arith.constant 0 : index
    %12 = vector.load %arg5[%c0_9, %c0_10] : memref<1x8xf32, #tpu.memory_space<vmem>>, vector<1x8xf32>
    %13 = vector.broadcast %12 : vector<1x8xf32> to vector<8x8xf32>
    %14 = arith.addf %11, %13 : vector<8x8xf32>
    %c0_11 = arith.constant 0 : index
    %c0_12 = arith.constant 0 : index
    %15 = vector.load %arg6[%c0_11, %c0_12] : memref<8x8xf32, #tpu.memory_space<vmem>>, vector<8x8xf32>
    tpu.vector_store %arg6[%c0_11, %c0_12], %14 {strides = array<i32>} : memref<8x8xf32, #tpu.memory_space<vmem>>, vector<8x8xf32>,
    return
  }
  func.func @transform_0(%arg0: i32) -> (i32, i32) {
    %c0_i32 = arith.constant 0 : i32
    %c0_i32_0 = arith.constant 0 : i32
    return %arg0, %c0_i32 : i32, i32
  }
  func.func @transform_1(%arg0: i32) -> (i32, i32) {
    %c0_i32 = arith.constant 0 : i32
    %c0_i32_0 = arith.constant 0 : i32
    %c0_i32_1 = arith.constant 0 : i32
    return %c0_i32, %c0_i32_0 : i32, i32
  }
  func.func @transform_2(%arg0: i32) -> (i32, i32) {
    %c0_i32 = arith.constant 0 : i32
    %c0_i32_0 = arith.constant 0 : i32
    %c0_i32_1 = arith.constant 0 : i32
    return %c0_i32, %c0_i32_0 : i32, i32
  }
  func.func @transform_3(%arg0: i32) -> (i32, i32) {
    %c0_i32 = arith.constant 0 : i32
    %c0_i32_0 = arith.constant 0 : i32
    %c0_i32_1 = arith.constant 0 : i32
    return %c0_i32, %c0_i32_0 : i32, i32
  }
  func.func @transform_4(%arg0: i32) -> (i32, i32) {
    %c0_i32 = arith.constant 0 : i32
    %c0_i32_0 = arith.constant 0 : i32
    %c0_i32_1 = arith.constant 0 : i32
    return %c0_i32, %c0_i32_0 : i32, i32
  }
  func.func @transform_5(%arg0: i32) -> (i32, i32) {
    %c0_i32 = arith.constant 0 : i32
    %c0_i32_0 = arith.constant 0 : i32
    return %arg0, %c0_i32 : i32, i32
  }
}

</mosaic_0001>

<llo_original>
// kernel: tpu_custom_call.1
$region0: #{tpu_custom_call.1}
  #allocation0 [shape = 'u32[]', space=smem, size = 0x4, offset = 0x4, fixed_abs, tag = 'smem constant byte address 0x4 - core index']
  #allocation1 [shape = 'u32[144,128]{1,0:T(1,128)}', space=vmem, size = 0x12000, scoped, tag = 'internal scratch']
  %s0 = inlined_call_operand.vmem [shape: f32[2,16], index: 0, kind: input, shape index: {}]
  %s1 = inlined_call_operand.vmem [shape: bf16[16,50], index: 1, kind: input, shape index: {}]
  %s2 = inlined_call_operand.vmem [shape: f32[1,50], index: 2, kind: input, shape index: {}]
  %s3 = inlined_call_operand.vmem [shape: bf16[50,8], index: 3, kind: input, shape index: {}]
  %s4 = inlined_call_operand.vmem [shape: f32[1,8], index: 4, kind: input, shape index: {}]
  %s5 = inlined_call_operand.hbm [shape: f32[2,8], index: 5, kind: output, shape index: {}]
  %s6 = sld [smem:[#allocation0]]
  $region30: #{tpu_custom_call.1} parent=0
    _
  %s8 = ssub.s32 1, %s6
  %s9 = scalar_select 0, %s8, %s6
  $region1: #{tpu_custom_call.1} parent=0
    #allocation2 [shape = 'u8[4096]{0}', space=vmem, size = 0x1000, scoped, tag = 'output window, operand 0, single buffered']
    #allocation3 [shape = 's32[1]{0}', space=sflag, size = 0x4, scoped, tag = 'scoped memory for tpu_custom_call.1']
    %10 = vsyncpa [#allocation3], 0
    // Predicated region
    $region2: #{tpu_custom_call.1} parent=1 // pred_check
      _
    $region3: #{tpu_custom_call.1} parent=1 // pred_check_branch
      %12 = sbr.rel (0) target = $region5
    $region4: #{tpu_custom_call.1} parent=1 // pred_region
      _
    $region5: #{tpu_custom_call.1} parent=1 // pred_fallthru
      _
    // Predicated region
    $region6: #{tpu_custom_call.1} parent=1 // pred_check
      _
    $region7: #{tpu_custom_call.1} parent=1 // pred_check_branch
      %14 = sbr.rel (0) target = $region9
    $region8: #{tpu_custom_call.1} parent=1 // pred_region
      _
    $region9: #{tpu_custom_call.1} parent=1 // pred_fallthru
      _
    // Predicated region
    $region10: #{tpu_custom_call.1} parent=1 // pred_check
      _
    $region11: #{tpu_custom_call.1} parent=1 // pred_check_branch
      %16 = sbr.rel (0) target = $region13
    $region12: #{tpu_custom_call.1} parent=1 // pred_region
      _
    $region13: #{tpu_custom_call.1} parent=1 // pred_fallthru
      _
    // Predicated region
    $region14: #{tpu_custom_call.1} parent=1 // pred_check
      _
    $region15: #{tpu_custom_call.1} parent=1 // pred_check_branch
      %18 = sbr.rel (0) target = $region17
    $region16: #{tpu_custom_call.1} parent=1 // pred_region
      _
    $region17: #{tpu_custom_call.1} parent=1 // pred_fallthru
      _
    // Predicated region
    $region18: #{tpu_custom_call.1} parent=1 // pred_check
      _
    $region19: #{tpu_custom_call.1} parent=1 // pred_check_branch
      %20 = sbr.rel (0) target = $region21
    $region20: #{tpu_custom_call.1} parent=1 // pred_region
      _
    $region21: #{tpu_custom_call.1} parent=1 // pred_fallthru
      _
    %v22 = vld [vmem:[%s0] sm:$0xff]
    %v23 = vpack.c.bf16 %v22, %v22
    %v24 = vld [vmem:[%s1] sm:$0xf]
    %v25 = vld [vmem:[%s1 + $0x4] sm:$0xf]
    %v26 = vld [vmem:[%s2] sm:$0x1]
    %v28 = vlaneseq
    %v29 = vshrl.u32 %v28, 7
    %v30 = vsub.s32 0, %v29
    %v31 = vrot.slane %v26, %v30
    %v35 = vunpack.c.l.b16 %v24
    %v36 = vunpack.c.l.b16 %v25
    %v37 = vpack.c.b16 %v36, %v35
    %vm39 = vcmask 130048
    %v41 = vsel %vm39, %v23, 0
    %43 = vmatprep.subr.bf16.mxu0 0
    %44 = vmatpush1.bf16.msra.mxu0 %v37
    %45 = vmatprep.subr.bf16.mxu0 0
    %46 = vmatpush1.bf16.msra.mxu0 0
    %47 = vmatprep.subr.bf16.mxu0 0
    %48 = vmatpush1.bf16.msra.mxu0 0
    %49 = vmatprep.subr.bf16.mxu0 0
    %50 = vmatpush1.bf16.msra.mxu0 0
    %51 = vmatprep.subr.bf16.mxu0 0
    %52 = vmatpush1.bf16.msra.mxu0 0
    %53 = vmatprep.subr.bf16.mxu0 0
    %54 = vmatpush1.bf16.msra.mxu0 0
    %55 = vmatprep.subr.bf16.mxu0 0
    %56 = vmatpush1.bf16.msra.mxu0 0
    %57 = vmatprep.subr.bf16.mxu0 0
    %58 = vmatpush1.bf16.msra.mxu0 0
    %59 = vmatprep.subr.bf16.mxu0 0
    %60 = vmatpush1.bf16.msra.mxu0 0
    %61 = vmatprep.subr.bf16.mxu0 0
    %62 = vmatpush1.bf16.msra.mxu0 0
    %63 = vmatprep.subr.bf16.mxu0 0
    %64 = vmatpush1.bf16.msra.mxu0 0
    %65 = vmatprep.subr.bf16.mxu0 0
    %66 = vmatpush1.bf16.msra.mxu0 0
    %67 = vmatprep.subr.bf16.mxu0 0
    %68 = vmatpush1.bf16.msra.mxu0 0
    %69 = vmatprep.subr.bf16.mxu0 0
    %70 = vmatpush1.bf16.msra.mxu0 0
    %71 = vmatprep.subr.bf16.mxu0 0
    %72 = vmatpush1.bf16.msra.mxu0 0
    %73 = vmatprep.subr.bf16.mxu0 0
    %74 = vmatpush1.bf16.msra.mxu0 0
    %75 = vmatprep.mubr.bf16.mxu0 0
    %76 = vmatmul.mubr.bf16.gmra.mrb[0].mxu0 %v41
    %v77 = vpop.f32.mrb[0].mxu0
    %v78 = vadd.f32 %v31, %v77
    %v79 = vpop.f32.mrb[0].mxu0
    %v80 = vpop.f32.mrb[0].mxu0
    %v81 = vpop.f32.mrb[0].mxu0
    %82 = vdwg.mxu0
    %v83 = vmax.f32 %v78, 0.0
    %v84 = vpack.c.bf16 %v83, %v83
    %v85 = vld [vmem:[%s3] sm:$0xf]
    %v86 = vld [vmem:[%s3 + $0x4] sm:$0xf]
    %v87 = vld [vmem:[%s3 + $0x8] sm:$0xf]
    %v88 = vld [vmem:[%s3 + $0xc] sm:$0xf]
    %v89 = vld [vmem:[%s3 + $0x10] sm:$0xf]
    %v90 = vld [vmem:[%s3 + $0x14] sm:$0xf]
    %v91 = vld [vmem:[%s3 + $0x18] sm:$0x1]
    %v92 = vld [vmem:[%s4] sm:$0x1]
    %v94 = vlaneseq
    %v95 = vshrl.u32 %v94, 7
    %v96 = vsub.s32 0, %v95
    %v97 = vrot.slane %v92, %v96
    %v106 = vunpack.c.l.b16 %v85
    %v107 = vunpack.c.l.b16 %v86
    %v108 = vunpack.c.l.b16 %v87
    %v109 = vunpack.c.l.b16 %v88
    %v110 = vunpack.c.l.b16 %v89
    %v111 = vunpack.c.l.b16 %v90
    %v112 = vunpack.c.l.b16 %v91
    %v113 = vpack.c.b16 %v107, %v106
    %v114 = vpack.c.b16 %v109, %v108
    %v115 = vpack.c.b16 %v111, %v110
    %v116 = vpack.c.b16 %v112, %v112
    %vm120 = vcmask 408576
    %v122 = vsel %vm120, %v84, 0
    %vm124 = vcmask 1040384
    %v126 = vsel %vm124, %v116, 0
    %128 = vmatprep.subr.bf16.mxu0 0
    %129 = vmatpush1.bf16.msra.mxu0 %v113
    %130 = vmatprep.subr.bf16.mxu0 0
    %131 = vmatpush1.bf16.msra.mxu0 %v114
    %132 = vmatprep.subr.bf16.mxu0 0
    %133 = vmatpush1.bf16.msra.mxu0 %v115
    %134 = vmatprep.subr.bf16.mxu0 0
    %135 = vmatpush1.bf16.msra.mxu0 %v126
    %136 = vmatprep.subr.bf16.mxu0 0
    %137 = vmatpush1.bf16.msra.mxu0 0
    %138 = vmatprep.subr.bf16.mxu0 0
    %139 = vmatpush1.bf16.msra.mxu0 0
    %140 = vmatprep.subr.bf16.mxu0 0
    %141 = vmatpush1.bf16.msra.mxu0 0
    %142 = vmatprep.subr.bf16.mxu0 0
    %143 = vmatpush1.bf16.msra.mxu0 0
    %144 = vmatprep.subr.bf16.mxu0 0
    %145 = vmatpush1.bf16.msra.mxu0 0
    %146 = vmatprep.subr.bf16.mxu0 0
    %147 = vmatpush1.bf16.msra.mxu0 0
    %148 = vmatprep.subr.bf16.mxu0 0
    %149 = vmatpush1.bf16.msra.mxu0 0
    %150 = vmatprep.subr.bf16.mxu0 0
    %151 = vmatpush1.bf16.msra.mxu0 0
    %152 = vmatprep.subr.bf16.mxu0 0
    %153 = vmatpush1.bf16.msra.mxu0 0
    %154 = vmatprep.subr.bf16.mxu0 0
    %155 = vmatpush1.bf16.msra.mxu0 0
    %156 = vmatprep.subr.bf16.mxu0 0
    %157 = vmatpush1.bf16.msra.mxu0 0
    %158 = vmatprep.subr.bf16.mxu0 0
    %159 = vmatpush1.bf16.msra.mxu0 0
    %160 = vmatprep.mubr.bf16.mxu0 0
    %161 = vmatmul.mubr.bf16.gmra.mrb[0].mxu0 %v122
    %v162 = vpop.f32.mrb[0].mxu0
    %v163 = vadd.f32 %v97, %v162
    %v164 = vpop.f32.mrb[0].mxu0
    %v165 = vpop.f32.mrb[0].mxu0
    %v166 = vpop.f32.mrb[0].mxu0
    %167 = vdwg.mxu0
    %vm168 = vcmask 64512
    %169 = vst.msk [vmem:[#allocation2] sm:$0xff] %vm168, %v163
    // Predicated region
    $region22: #{tpu_custom_call.1} parent=1 // pred_check
      _
    $region23: #{tpu_custom_call.1} parent=1 // pred_check_branch
      %171 = sbr.rel (0) target = $region25
    $region24: #{tpu_custom_call.1} parent=1 // pred_region
      %s173 = ssub.s32 128, 32
      %174 = vsyncadd [#allocation3], %s173
      %s175 = sshll.u32 [#allocation2], 4
      %s176 = int_to_ptr.vmem [resolvable:$true] %s175
      %181 = dma.vmem_to_hbm [thread:$0]  %s176, 32, %s5, [#allocation3], 32, 32, 2
    $region25: #{tpu_custom_call.1} parent=1 // pred_fallthru
      _
    // Predicated region
    $region26: #{tpu_custom_call.1} parent=1 // pred_check
      _
    $region27: #{tpu_custom_call.1} parent=1 // pred_check_branch
      %183 = sbr.rel (0) target = $region29
    $region28: #{tpu_custom_call.1} parent=1 // pred_region
      %184 = dma.done [#allocation3], 128
    $region29: #{tpu_custom_call.1} parent=1 // pred_fallthru
      _
    %185 = vsyncpa [#allocation3], 1

</llo_original>
